<compile_context>
chip_gen: v7x
topology: tpu7x:2x2x1
jax: 0.10.0
libtpu: 0.0.40
codegen_flags: <defaults>
</compile_context>

<pallas_src>
import math

import jax
import jax.numpy as jnp
from jax.experimental import pallas as pl
from jax.experimental.pallas import tpu as pltpu


# ----------------------------- helpers ------------------------------------------
def _round_up(x, m):
    return ((x + m - 1) // m) * m


def unfold_patches_jax(pixel_values, patch_size):
    """Exact port of torch.nn.Unfold(kernel_size=p, stride=p) + permute(0, 2, 1).

    (B, C, H, W) -> (B, L, C*p*p) with L = (H//p)*(W//p); the feature axis is
    ordered (channel, row-in-patch, col-in-patch), matching torch.nn.Unfold.
    """
    b, c, h, w = pixel_values.shape
    p = patch_size
    gh, gw = h // p, w // p
    x = pixel_values.reshape(b, c, gh, p, gw, p)
    x = jnp.transpose(x, (0, 2, 4, 1, 3, 5))  # (b, gh, gw, c, p, p)
    return x.reshape(b, gh * gw, c * p * p)


def _choose_tile_m(T, tile_m_max=1024):
    """Pick the M tile for the token grid.

    Preference order: exact divisor of T (no pad / no post-slice), >= 128 and
    a multiple of 16 (bf16 sublane packing), even grid length (v7x megacore
    split), multiple of 256 (v6e/v7x MXU M granularity), then as large as
    possible.  Falls back to a padded tile when no divisor works.
    """
    cap = max(128, min(_round_up(tile_m_max, 16), _round_up(T, 16)))
    candidates = [tm for tm in range(128, cap + 1, 16) if T % tm == 0]
    if candidates:
        def score(tm):
            grid = T // tm
            return ((grid % 2 == 0), (tm % 256 == 0), tm)
        return max(candidates, key=score)
    # No exact divisor >= 128: use the largest allowed tile and pad T up to it.
    return cap


def _step_vmem_bytes(tile_m, d_in, d_out, in_isz, w_isz, out_isz):
    # Double-buffered input / weight / output tiles, lane dim rounded to 128
    # (Mosaic layout padding).
    d_in_l = _round_up(d_in, 128)
    d_out_l = _round_up(d_out, 128)
    return (2 * tile_m * d_in_l * in_isz
            + 2 * d_in_l * d_out_l * w_isz
            + 2 * tile_m * d_out_l * out_isz)


# ----------------------------- Pallas kernel ------------------------------------
def _patch_linear_kernel(x_ref, w_ref, o_ref):
    # Bias-free linear: (tile_m, d_in) @ (d_in, d_out) on the MXU,
    # bf16 operands, f32 accumulation, bf16 store (lane-dense output).
    o_ref[...] = jnp.dot(
        x_ref[...], w_ref[...], preferred_element_type=jnp.float32
    ).astype(o_ref.dtype)


def patch_linear_pallas(x2d, w, *, tile_m_max=1024, out_dtype=None):
    """x2d: (T, d_in); w: (d_in, d_out) -> (T, d_out) in out_dtype (default x2d.dtype)."""
    T, d_in = x2d.shape
    d_in_w, d_out = w.shape
    assert d_in == d_in_w, (d_in, d_in_w)
    if out_dtype is None:
        out_dtype = x2d.dtype  # keep the output in the activation dtype (bf16)

    tile_m = _choose_tile_m(T, tile_m_max)

    # Keep per-step buffers well under the scoped VMEM budget (v7x physical
    # VMEM is 64 MiB); shrink the tile if a pathological shape blows it up.
    vmem_budget = 48 * 1024 * 1024
    while tile_m > 128 and _step_vmem_bytes(
            tile_m, d_in, d_out, x2d.dtype.itemsize, w.dtype.itemsize,
            jnp.dtype(out_dtype).itemsize) > vmem_budget:
        tile_m = max(128, _round_up(tile_m // 2, 16))

    T_pad = _round_up(T, tile_m)
    if T_pad != T:
        # Fallback path only (no exact divisor found): padded zero rows produce
        # zero outputs and are sliced off below.
        x2d = jnp.pad(x2d, ((0, T_pad - T), (0, 0)))
    grid = (T_pad // tile_m,)

    step_bytes = _step_vmem_bytes(
        tile_m, d_in, d_out, x2d.dtype.itemsize, w.dtype.itemsize,
        jnp.dtype(out_dtype).itemsize)
    vmem_limit = max(32 * 1024 * 1024, int(step_bytes * 1.25))

    bytes_accessed = (
        T_pad * d_in * x2d.dtype.itemsize
        + d_in * d_out * w.dtype.itemsize            # weight fetched once
        + T_pad * d_out * jnp.dtype(out_dtype).itemsize
    )
    cost = pl.CostEstimate(
        flops=2 * T_pad * d_in * d_out,
        transcendentals=0,
        bytes_accessed=bytes_accessed,
    )

    out = pl.pallas_call(
        _patch_linear_kernel,
        out_shape=jax.ShapeDtypeStruct((T_pad, d_out), out_dtype),
        grid_spec=pltpu.PrefetchScalarGridSpec(
            num_scalar_prefetch=0,
            grid=grid,
            in_specs=[
                # Activations: one (tile_m, d_in) row-slab per grid step.
                pl.BlockSpec((tile_m, d_in), lambda i: (i, 0)),
                # Weight: constant index_map -> DMA'd once, VMEM-resident for
                # the whole grid (no per-step re-fetch).
                pl.BlockSpec((d_in, d_out), lambda i: (0, 0)),
            ],
            out_specs=pl.BlockSpec((tile_m, d_out), lambda i: (i, 0)),
        ),
        compiler_params=pltpu.CompilerParams(
            dimension_semantics=("parallel",),  # megacore-split M tiles on v7x
            vmem_limit_bytes=vmem_limit,
        ),
        cost_estimate=cost,
    )(x2d, w)
    return out[:T] if T_pad != T else out


# ----------------------------- module wrapper ------------------------------------
class Llama4UnfoldConvolutionPallas:
    """JAX/Pallas port of Llama4UnfoldConvolution (unfold -> permute -> Linear, no bias)."""

    def __init__(self, *, patch_size, num_channels, hidden_size, key,
                 param_dtype=jnp.bfloat16, tile_m_max=1024):
        self.patch_size = patch_size
        self.hidden_size = hidden_size
        self.tile_m_max = tile_m_max
        self.compute_dtype = param_dtype
        d_in = num_channels * patch_size * patch_size
        bound = 1.0 / math.sqrt(d_in)
        # PyTorch Linear default init: uniform(-1/sqrt(in), 1/sqrt(in)).
        # Weight is (out, in) in PyTorch; store pre-transposed (in, out) and
        # pre-cast to bf16 once so both MXU operands are bf16.
        self.weight = jax.random.uniform(
            key, (d_in, hidden_size), jnp.float32, minval=-bound, maxval=bound
        ).astype(param_dtype)

    def __call__(self, pixel_values):
        b = pixel_values.shape[0]
        # Cast BEFORE the unfold transpose: the HBM->HBM rearrangement then
        # moves bf16 bytes and the separate cast pass over the pixel tensor
        # disappears.
        x = pixel_values.astype(self.compute_dtype)
        patches = unfold_patches_jax(x, self.patch_size)
        _, num_patches, d_in = patches.shape
        x2d = patches.reshape(b * num_patches, d_in)
        out2d = patch_linear_pallas(
            x2d, self.weight, tile_m_max=self.tile_m_max,
            out_dtype=self.compute_dtype)
        return out2d.reshape(b, num_patches, self.hidden_size)


# ----------------------------- reference (pure JAX) -------------------------------
def _reference(pixel_values, module):
    # Same operand dtype policy as the kernel (bf16 operands, f32 accumulation)
    # so the comparison validates the kernel, not the dtype policy.
    patches = unfold_patches_jax(
        pixel_values.astype(module.weight.dtype), module.patch_size)
    return jnp.einsum(
        "bld,do->blo", patches, module.weight,
        preferred_element_type=jnp.float32,
    )


if __name__ == "__main__":
    # Small config consistent with the module:
    #   2 images, 3 channels, 64x64 pixels, patch_size=4 -> 256 patches/image,
    #   d_in = 3*4*4 = 48, hidden_size = 256.
    #   T = 2*256 = 512 tokens -> tile_m=256 (divides T, mult of 256, even grid).
    B, C, H, W = 2, 3, 64, 64
    PATCH = 4
    HIDDEN = 256

    key = jax.random.PRNGKey(0)
    k_x, k_w = jax.random.split(key)
    pixel_values = jax.random.normal(k_x, (B, C, H, W), jnp.float32)

    module = Llama4UnfoldConvolutionPallas(
        patch_size=PATCH, num_channels=C, hidden_size=HIDDEN, key=k_w
    )

    out = jax.block_until_ready(module(pixel_values))

    num_patches = (H // PATCH) * (W // PATCH)
    assert out.shape == (B, num_patches, HIDDEN), out.shape
    assert out.dtype == module.compute_dtype, out.dtype

    ref = _reference(pixel_values, module)
    out_f32 = out.astype(jnp.float32)
    max_err = float(jnp.max(jnp.abs(out_f32 - ref)))
    # Output is stored in bf16 -> tolerance at bf16 rounding level.
    assert jnp.allclose(out_f32, ref, atol=3e-2, rtol=3e-2), (
        f"mismatch, max_err={max_err}")

    print("KERNEL_OK")
</pallas_src>

<mosaic_0001>
module attributes {stable_mosaic.version = 11 : i64} {
  func.func @_patch_linear_kernel(%arg0: i32, %arg1: memref<256x48xbf16, #tpu.memory_space<vmem>>, %arg2: memref<48x256xbf16, #tpu.memory_space<vmem>>, %arg3: memref<256x256xbf16, #tpu.memory_space<vmem>>) attributes {dimension_semantics = [#tpu.dimension_semantics<parallel>], iteration_bounds = array<i64: 2>, scalar_prefetch = 0 : i64, scratch_operands = 0 : i64, tpu.core_type = #tpu.core_type<tc>, window_params = [{transform_indices = @transform_0, window_bounds = array<i64: 256, 48>}, {pipeline_mode = #tpu.pipeline_mode<synchronous>, transform_indices = @transform_1, window_bounds = array<i64: 48, 256>}, {transform_indices = @transform_2, window_bounds = array<i64: 256, 256>}]} {
    %c0 = arith.constant 0 : index
    %c0_0 = arith.constant 0 : index
    %0 = vector.load %arg1[%c0, %c0_0] : memref<256x48xbf16, #tpu.memory_space<vmem>>, vector<256x48xbf16>
    %c0_1 = arith.constant 0 : index
    %c0_2 = arith.constant 0 : index
    %1 = vector.load %arg2[%c0_1, %c0_2] : memref<48x256xbf16, #tpu.memory_space<vmem>>, vector<48x256xbf16>
    %cst = arith.constant dense<0.000000e+00> : vector<256x256xf32>
    %2 = tpu.matmul %0, %1, %cst {dimension_numbers = #tpu.dot_dimension_numbers<[1], [0], [0], [1], [0, 0, 1, 1], [], []>} : vector<256x48xbf16>, vector<48x256xbf16>, vector<256x256xf32> -> vector<256x256xf32>
    %3 = arith.truncf %2 : vector<256x256xf32> to vector<256x256xbf16>
    %c0_3 = arith.constant 0 : index
    %c0_4 = arith.constant 0 : index
    %4 = vector.load %arg3[%c0_3, %c0_4] : memref<256x256xbf16, #tpu.memory_space<vmem>>, vector<256x256xbf16>
    tpu.vector_store %arg3[%c0_3, %c0_4], %3 {strides = array<i32>} : memref<256x256xbf16, #tpu.memory_space<vmem>>, vector<256x256xbf16>,
    return
  }
  func.func @transform_0(%arg0: i32) -> (i32, i32) {
    %c0_i32 = arith.constant 0 : i32
    %c0_i32_0 = arith.constant 0 : i32
    return %arg0, %c0_i32 : i32, i32
  }
  func.func @transform_1(%arg0: i32) -> (i32, i32) {
    %c0_i32 = arith.constant 0 : i32
    %c0_i32_0 = arith.constant 0 : i32
    %c0_i32_1 = arith.constant 0 : i32
    return %c0_i32, %c0_i32_0 : i32, i32
  }
  func.func @transform_2(%arg0: i32) -> (i32, i32) {
    %c0_i32 = arith.constant 0 : i32
    %c0_i32_0 = arith.constant 0 : i32
    return %arg0, %c0_i32 : i32, i32
  }
}

</mosaic_0001>

<llo_original>
// kernel: tpu_custom_call.1
$region0: #{tpu_custom_call.1}
  #allocation0 [shape = 'u32[]', space=smem, size = 0x4, offset = 0x4, fixed_abs, tag = 'smem constant byte address 0x4 - core index']
  #allocation1 [shape = 'u32[144,128]{1,0:T(1,128)}', space=vmem, size = 0x12000, scoped, tag = 'internal scratch']
  %s0 = inlined_call_operand.vmem [shape: bf16[512,48], index: 0, kind: input, shape index: {}]
  %s1 = inlined_call_operand.vmem [shape: bf16[48,256], index: 1, kind: input, shape index: {}]
  %s2 = inlined_call_operand.hbm [shape: bf16[512,256], index: 2, kind: output, shape index: {}]
  %s3 = sld [smem:[#allocation0]]
  $region41: #{tpu_custom_call.1} parent=0
    _
  %s5 = ssub.s32 1, %s3
  %s6 = scalar_select 0, %s5, %s3
  $region1: #{tpu_custom_call.1} parent=0
    #allocation2 [shape = 'u8[262144]{0}', space=vmem, size = 0x40000, scoped, tag = 'output window, operand 0']
    #allocation3 [shape = 's32[2]{0}', space=sflag, size = 0x8, scoped, tag = 'scoped memory for tpu_custom_call.1']
    %7 = vsyncpa [#allocation3], 0
    %s8 = scalar_lea.sflag [#allocation3], 1
    %9 = vsyncpa %s8, 0
    loop: start=0, step=1, limit=4
    $region2: #{tpu_custom_call.1} parent=1 // loop_pre_header
      _
    $region3: #{tpu_custom_call.1} parent=1 // loop_header
      %s11 = sphi 0, %s15
      %p12 = scmp.ge.s32.totalorder %s11, 4
      %s21 = sphi 0, %s23
      %s24 = sphi 0, %s21
      %s25 = sphi 0, %s24
      %s41 = sphi 0, %s25
      %s45 = sphi 0, %s45
      %s47 = sphi 0, %s45
      %s48 = sphi 0, %s47
      %s62 = sphi 0, %s48
      %s68 = sphi 0, %s70
      %s71 = sphi 0, %s68
      %s72 = sphi 0, %s71
      %s88 = sphi 0, %s72
    $region4: #{tpu_custom_call.1} parent=1 // loop_header_branch
      %14 = sbr.rel (%p12) target = $region8
    $region5: #{tpu_custom_call.1} parent=1 // loop_body
      %s16 = ssub.s32 %s11, 1
      %s17 = ssub.s32 %s11, 2
      %s18 = sadd.s32 %s11, 1
      %s19 = ssub.s32 %s11, %s18
      %p20 = scmp.eq.s32.totalorder %s19, 0
      %s22 = sadd.s32 %s21, 1
      %s23 = scalar_select %p20, %s21, %s22
      %p26 = pneg %p20
      %p27 = scmp.eq.s32.totalorder %s11, 1
      %p28 = por %p26, %p27
      %p29 = scmp.ne.s32.totalorder %s21, %s24
      %p30 = scmp.eq.s32.totalorder %s11, 0
      %p31 = por %p29, %p30
      %p32 = scmp.ne.s32.totalorder %s21, %s24
      %p33 = scmp.eq.s32.totalorder %s16, 1
      %p34 = por %p32, %p33
      %p35 = scmp.ne.s32.totalorder %s24, %s25
      %p36 = scmp.eq.s32.totalorder %s16, 0
      %p37 = por %p35, %p36
      %p38 = scmp.ne.s32.totalorder %s24, %s25
      %p39 = scmp.eq.s32.totalorder %s17, 1
      %p40 = por %p38, %p39
      %p42 = scmp.ne.s32.totalorder %s25, %s41
      %p43 = scmp.eq.s32.totalorder %s17, 0
      %p44 = por %p42, %p43
      %s46 = sadd.s32 %s45, 1
      %p49 = scmp.eq.s32.totalorder %s11, 1
      %p50 = scmp.ne.s32.totalorder %s45, %s47
      %p51 = scmp.eq.s32.totalorder %s11, 0
      %p52 = por %p50, %p51
      %p53 = scmp.ne.s32.totalorder %s45, %s47
      %p54 = scmp.eq.s32.totalorder %s16, 1
      %p55 = por %p53, %p54
      %p56 = scmp.ne.s32.totalorder %s47, %s48
      %p57 = scmp.eq.s32.totalorder %s16, 0
      %p58 = por %p56, %p57
      %p59 = scmp.ne.s32.totalorder %s47, %s48
      %p60 = scmp.eq.s32.totalorder %s17, 1
      %p61 = por %p59, %p60
      %p63 = scmp.ne.s32.totalorder %s48, %s62
      %p64 = scmp.eq.s32.totalorder %s17, 0
      %p65 = por %p63, %p64
      %s66 = ssub.s32 %s11, %s18
      %p67 = scmp.eq.s32.totalorder %s66, 0
      %s69 = sadd.s32 %s68, 1
      %s70 = scalar_select %p67, %s68, %s69
      %p73 = pneg %p67
      %p74 = scmp.eq.s32.totalorder %s11, 1
      %p75 = por %p73, %p74
      %p76 = scmp.ne.s32.totalorder %s68, %s71
      %p77 = scmp.eq.s32.totalorder %s11, 0
      %p78 = por %p76, %p77
      %p79 = scmp.ne.s32.totalorder %s68, %s71
      %p80 = scmp.eq.s32.totalorder %s16, 1
      %p81 = por %p79, %p80
      %p82 = scmp.ne.s32.totalorder %s71, %s72
      %p83 = scmp.eq.s32.totalorder %s16, 0
      %p84 = por %p82, %p83
      %p85 = scmp.ne.s32.totalorder %s71, %s72
      %p86 = scmp.eq.s32.totalorder %s17, 1
      %p87 = por %p85, %p86
      %p89 = scmp.ne.s32.totalorder %s72, %s88
      %p90 = scmp.eq.s32.totalorder %s17, 0
      %p91 = por %p89, %p90
      %p92 = scmp.le.s32.totalorder 1, %s11
      %p93 = scmp.lt.s32.totalorder %s11, 3
      %p94 = pnand %p92, %p93
      %p95 = pneg %p94
      // Predicated region
      $region9: #{tpu_custom_call.1} parent=5 // pred_check
        _
      $region10: #{tpu_custom_call.1} parent=5 // pred_check_branch
        %97 = sbr.rel (%p94) target = $region12
      $region11: #{tpu_custom_call.1} parent=5 // pred_region
        %s98 = ssub.s32 %s11, 1
        // Predicated region
        $region13: #{tpu_custom_call.1} parent=11 // pred_check
          %p99 = pneg %p58
        $region14: #{tpu_custom_call.1} parent=11 // pred_check_branch
          %101 = sbr.rel (%p99) target = $region16
        $region15: #{tpu_custom_call.1} parent=11 // pred_region
          _
        $region16: #{tpu_custom_call.1} parent=11 // pred_fallthru
          _
      $region12: #{tpu_custom_call.1} parent=5 // pred_fallthru
        _
      %p102 = scmp.lt.s32.totalorder %s11, 2
      // Predicated region
      $region17: #{tpu_custom_call.1} parent=5 // pred_check
        %p103 = pneg %p102
      $region18: #{tpu_custom_call.1} parent=5 // pred_check_branch
        %105 = sbr.rel (%p103) target = $region20
      $region19: #{tpu_custom_call.1} parent=5 // pred_region
        // Predicated region
        $region21: #{tpu_custom_call.1} parent=19 // pred_check
          %p106 = pneg %p31
        $region22: #{tpu_custom_call.1} parent=19 // pred_check_branch
          %108 = sbr.rel (%p106) target = $region24
        $region23: #{tpu_custom_call.1} parent=19 // pred_region
          %s109 = smul.u32 32, %s11
          %p110 = scmp.lt.s32.totalorder %s109, 63
          %s111 = scalar_select %p110, %s109, 63
          %s112 = smul.addr %s111, 4
          %s113 = scalar_lea.vmem %s0, %s112
          %s114 = smul.u32 32, %s11
        $region24: #{tpu_custom_call.1} parent=19 // pred_fallthru
          _
      $region20: #{tpu_custom_call.1} parent=5 // pred_fallthru
        _
      %p115 = scmp.le.s32.totalorder 1, %s11
      %p116 = scmp.lt.s32.totalorder %s11, 3
      %p117 = pnand %p115, %p116
      %p118 = pneg %p117
      // Predicated region
      $region25: #{tpu_custom_call.1} parent=5 // pred_check
        _
      $region26: #{tpu_custom_call.1} parent=5 // pred_check_branch
        %120 = sbr.rel (%p117) target = $region28
      $region27: #{tpu_custom_call.1} parent=5 // pred_region
        %s121 = ssub.s32 %s11, 1
        %s122 = smul.u32 32, %s16
        %p123 = scmp.lt.s32.totalorder %s122, 63
        %s124 = scalar_select %p123, %s122, 63
        %s125 = smul.addr %s124, 4
        %s126 = scalar_lea.vmem %s0, %s125
        %p127 = pneg %p37
        %p128 = pneg %p34
        %p129 = pneg %p58
        %p130 = pneg %p55
        %p131 = pneg %p84
        %p132 = pneg %p81
        %s133 = sand.u32 %s71, 1
        %s134 = scalar_lea.sflag [#allocation3], %s133
        %s135 = sand.u32 %s71, 1
        %s136 = smul.addr %s135, 256
        %s137 = scalar_lea.vmem [#allocation2], %s136
        %s138 = smul.u32 32, %s16
        %p139 = scmp.lt.s32.totalorder %s138, 63
        %s140 = scalar_select %p139, %s138, 63
        %s141 = smul.addr %s140, 4
        %s142 = scalar_lea.vmem %s0, %s141
        %s143 = smul.u32 32, %s16
        %s144 = smul.u32 32, %s16
        %v146 = vld [vmem:[%s142] sm:$0xf]
        %v147 = vld [vmem:[%s142 + $0x4] sm:$0xf]
        %v148 = vld [vmem:[%s142 + $0x8] sm:$0xf]
        %v149 = vld [vmem:[%s142 + $0xc] sm:$0xf]
        %v150 = vld [vmem:[%s142 + $0x10] sm:$0xf]
        %v151 = vld [vmem:[%s142 + $0x14] sm:$0xf]
        %v152 = vld [vmem:[%s142 + $0x18] sm:$0xf]
        %v153 = vld [vmem:[%s142 + $0x1c] sm:$0xf]
        %v154 = vld [vmem:[%s142 + $0x20] sm:$0xf]
        %v155 = vld [vmem:[%s142 + $0x24] sm:$0xf]
        %v156 = vld [vmem:[%s142 + $0x28] sm:$0xf]
        %v157 = vld [vmem:[%s142 + $0x2c] sm:$0xf]
        %v158 = vld [vmem:[%s142 + $0x30] sm:$0xf]
        %v159 = vld [vmem:[%s142 + $0x34] sm:$0xf]
        %v160 = vld [vmem:[%s142 + $0x38] sm:$0xf]
        %v161 = vld [vmem:[%s142 + $0x3c] sm:$0xf]
        %v162 = vld [vmem:[%s142 + $0x40] sm:$0xf]
        %v163 = vld [vmem:[%s142 + $0x44] sm:$0xf]
        %v164 = vld [vmem:[%s142 + $0x48] sm:$0xf]
        %v165 = vld [vmem:[%s142 + $0x4c] sm:$0xf]
        %v166 = vld [vmem:[%s142 + $0x50] sm:$0xf]
        %v167 = vld [vmem:[%s142 + $0x54] sm:$0xf]
        %v168 = vld [vmem:[%s142 + $0x58] sm:$0xf]
        %v169 = vld [vmem:[%s142 + $0x5c] sm:$0xf]
        %v170 = vld [vmem:[%s142 + $0x60] sm:$0xf]
        %v171 = vld [vmem:[%s142 + $0x64] sm:$0xf]
        %v172 = vld [vmem:[%s142 + $0x68] sm:$0xf]
        %v173 = vld [vmem:[%s142 + $0x6c] sm:$0xf]
        %v174 = vld [vmem:[%s142 + $0x70] sm:$0xf]
        %v175 = vld [vmem:[%s142 + $0x74] sm:$0xf]
        %v176 = vld [vmem:[%s142 + $0x78] sm:$0xf]
        %v177 = vld [vmem:[%s142 + $0x7c] sm:$0xf]
        %v178 = vld [vmem:[%s1] sm:$0xff]
        %v179 = vld [vmem:[%s1 + $0x8] sm:$0xff]
        %v180 = vld [vmem:[%s1 + $0x10] sm:$0xff]
        %v181 = vld [vmem:[%s1 + $0x18] sm:$0xff]
        %v182 = vld [vmem:[%s1 + $0x20] sm:$0xff]
        %v183 = vld [vmem:[%s1 + $0x28] sm:$0xff]
        %v216 = vunpack.c.l.b16 %v146
        %v217 = vunpack.c.l.b16 %v147
        %v218 = vunpack.c.l.b16 %v148
        %v219 = vunpack.c.l.b16 %v149
        %v220 = vunpack.c.l.b16 %v150
        %v221 = vunpack.c.l.b16 %v151
        %v222 = vunpack.c.l.b16 %v152
        %v223 = vunpack.c.l.b16 %v153
        %v224 = vunpack.c.l.b16 %v154
        %v225 = vunpack.c.l.b16 %v155
        %v226 = vunpack.c.l.b16 %v156
        %v227 = vunpack.c.l.b16 %v157
        %v228 = vunpack.c.l.b16 %v158
        %v229 = vunpack.c.l.b16 %v159
        %v230 = vunpack.c.l.b16 %v160
        %v231 = vunpack.c.l.b16 %v161
        %v232 = vunpack.c.l.b16 %v162
        %v233 = vunpack.c.l.b16 %v163
        %v234 = vunpack.c.l.b16 %v164
        %v235 = vunpack.c.l.b16 %v165
        %v236 = vunpack.c.l.b16 %v166
        %v237 = vunpack.c.l.b16 %v167
        %v238 = vunpack.c.l.b16 %v168
        %v239 = vunpack.c.l.b16 %v169
        %v240 = vunpack.c.l.b16 %v170
        %v241 = vunpack.c.l.b16 %v171
        %v242 = vunpack.c.l.b16 %v172
        %v243 = vunpack.c.l.b16 %v173
        %v244 = vunpack.c.l.b16 %v174
        %v245 = vunpack.c.l.b16 %v175
        %v246 = vunpack.c.l.b16 %v176
        %v247 = vunpack.c.l.b16 %v177
        %v248 = vpack.c.b16 %v217, %v216
        %v249 = vpack.c.b16 %v219, %v218
        %v250 = vpack.c.b16 %v221, %v220
        %v251 = vpack.c.b16 %v223, %v222
        %v252 = vpack.c.b16 %v225, %v224
        %v253 = vpack.c.b16 %v227, %v226
        %v254 = vpack.c.b16 %v229, %v228
        %v255 = vpack.c.b16 %v231, %v230
        %v256 = vpack.c.b16 %v233, %v232
        %v257 = vpack.c.b16 %v235, %v234
        %v258 = vpack.c.b16 %v237, %v236
        %v259 = vpack.c.b16 %v239, %v238
        %v260 = vpack.c.b16 %v241, %v240
        %v261 = vpack.c.b16 %v243, %v242
        %v262 = vpack.c.b16 %v245, %v244
        %v263 = vpack.c.b16 %v247, %v246
        %v270 = vunpack.c.l.b16 %v178
        %v271 = vunpack.c.h.b16 %v178
        %v272 = vunpack.c.l.b16 %v179
        %v273 = vunpack.c.h.b16 %v179
        %v274 = vunpack.c.l.b16 %v180
        %v275 = vunpack.c.h.b16 %v180
        %v276 = vunpack.c.l.b16 %v181
        %v277 = vunpack.c.h.b16 %v181
        %v278 = vunpack.c.l.b16 %v182
        %v279 = vunpack.c.h.b16 %v182
        %v280 = vunpack.c.l.b16 %v183
        %v281 = vunpack.c.h.b16 %v183
        %v282 = vpack.c.b16 %v272, %v270
        %v283 = vpack.c.b16 %v273, %v271
        %v284 = vpack.c.b16 %v276, %v274
        %v285 = vpack.c.b16 %v277, %v275
        %v286 = vpack.c.b16 %v280, %v278
        %v287 = vpack.c.b16 %v281, %v279
        %vm294 = vcmask 392192
        %v296 = vsel %vm294, %v248, 0
        %v299 = vsel %vm294, %v249, 0
        %v302 = vsel %vm294, %v250, 0
        %v305 = vsel %vm294, %v251, 0
        %v308 = vsel %vm294, %v252, 0
        %v311 = vsel %vm294, %v253, 0
        %v314 = vsel %vm294, %v254, 0
        %v317 = vsel %vm294, %v255, 0
        %v320 = vsel %vm294, %v256, 0
        %v323 = vsel %vm294, %v257, 0
        %v326 = vsel %vm294, %v258, 0
        %v329 = vsel %vm294, %v259, 0
        %v332 = vsel %vm294, %v260, 0
        %v335 = vsel %vm294, %v261, 0
        %v338 = vsel %vm294, %v262, 0
        %v341 = vsel %vm294, %v263, 0
        %343 = vmatprep.subr.bf16.mxu0 %v283
        %344 = vmatpush1.bf16.msra.mxu0 %v282
        %345 = vmatprep.subr.bf16.mxu0 %v285
        %346 = vmatpush1.bf16.msra.mxu0 %v284
        %347 = vmatprep.subr.bf16.mxu0 %v287
        %348 = vmatpush1.bf16.msra.mxu0 %v286
        %349 = vmatprep.subr.bf16.mxu0 0
        %350 = vmatpush1.bf16.msra.mxu0 0
        %351 = vmatprep.subr.bf16.mxu0 0
        %352 = vmatpush1.bf16.msra.mxu0 0
        %353 = vmatprep.subr.bf16.mxu0 0
        %354 = vmatpush1.bf16.msra.mxu0 0
        %355 = vmatprep.subr.bf16.mxu0 0
        %356 = vmatpush1.bf16.msra.mxu0 0
        %357 = vmatprep.subr.bf16.mxu0 0
        %358 = vmatpush1.bf16.msra.mxu0 0
        %359 = vmatprep.subr.bf16.mxu0 0
        %360 = vmatpush1.bf16.msra.mxu0 0
        %361 = vmatprep.subr.bf16.mxu0 0
        %362 = vmatpush1.bf16.msra.mxu0 0
        %363 = vmatprep.subr.bf16.mxu0 0
        %364 = vmatpush1.bf16.msra.mxu0 0
        %365 = vmatprep.subr.bf16.mxu0 0
        %366 = vmatpush1.bf16.msra.mxu0 0
        %367 = vmatprep.subr.bf16.mxu0 0
        %368 = vmatpush1.bf16.msra.mxu0 0
        %369 = vmatprep.subr.bf16.mxu0 0
        %370 = vmatpush1.bf16.msra.mxu0 0
        %371 = vmatprep.subr.bf16.mxu0 0
        %372 = vmatpush1.bf16.msra.mxu0 0
        %373 = vmatprep.subr.bf16.mxu0 0
        %374 = vmatpush1.bf16.msra.mxu0 0
        %375 = vmatprep.mubr.bf16.mxu0 0
        %376 = vmatmul.mubr.bf16.gmra.mrb[0].mxu0 %v296
        %v377 = vpop.f32.mrb[0].mxu0
        %v378 = vadd.f32 0.0, %v377
        %v379 = vpop.f32.mrb[0].mxu0
        %v380 = vadd.f32 0.0, %v379
        %v381 = vpop.f32.mrb[0].mxu0
        %v382 = vadd.f32 0.0, %v381
        %v383 = vpop.f32.mrb[0].mxu0
        %v384 = vadd.f32 0.0, %v383
        %385 = vmatprep.mubr.bf16.mxu0 0
        %386 = vmatmul.mubr.bf16.gmra.mrb[0].mxu0 %v299
        %v387 = vpop.f32.mrb[0].mxu0
        %v388 = vadd.f32 0.0, %v387
        %v389 = vpop.f32.mrb[0].mxu0
        %v390 = vadd.f32 0.0, %v389
        %v391 = vpop.f32.mrb[0].mxu0
        %v392 = vadd.f32 0.0, %v391
        %v393 = vpop.f32.mrb[0].mxu0
        %v394 = vadd.f32 0.0, %v393
        %395 = vmatprep.mubr.bf16.mxu0 0
        %396 = vmatmul.mubr.bf16.gmra.mrb[0].mxu0 %v302
        %v397 = vpop.f32.mrb[0].mxu0
        %v398 = vadd.f32 0.0, %v397
        %v399 = vpop.f32.mrb[0].mxu0
        %v400 = vadd.f32 0.0, %v399
        %v401 = vpop.f32.mrb[0].mxu0
        %v402 = vadd.f32 0.0, %v401
        %v403 = vpop.f32.mrb[0].mxu0
        %v404 = vadd.f32 0.0, %v403
        %405 = vmatprep.mubr.bf16.mxu0 0
        %406 = vmatmul.mubr.bf16.gmra.mrb[0].mxu0 %v305
        %v407 = vpop.f32.mrb[0].mxu0
        %v408 = vadd.f32 0.0, %v407
        %v409 = vpop.f32.mrb[0].mxu0
        %v410 = vadd.f32 0.0, %v409
        %v411 = vpop.f32.mrb[0].mxu0
        %v412 = vadd.f32 0.0, %v411
        %v413 = vpop.f32.mrb[0].mxu0
        %v414 = vadd.f32 0.0, %v413
        %415 = vmatprep.mubr.bf16.mxu0 0
        %416 = vmatmul.mubr.bf16.gmra.mrb[0].mxu0 %v308
        %v417 = vpop.f32.mrb[0].mxu0
        %v418 = vadd.f32 0.0, %v417
        %v419 = vpop.f32.mrb[0].mxu0
        %v420 = vadd.f32 0.0, %v419
        %v421 = vpop.f32.mrb[0].mxu0
        %v422 = vadd.f32 0.0, %v421
        %v423 = vpop.f32.mrb[0].mxu0
        %v424 = vadd.f32 0.0, %v423
        %425 = vmatprep.mubr.bf16.mxu0 0
        %426 = vmatmul.mubr.bf16.gmra.mrb[0].mxu0 %v311
        %v427 = vpop.f32.mrb[0].mxu0
        %v428 = vadd.f32 0.0, %v427
        %v429 = vpop.f32.mrb[0].mxu0
        %v430 = vadd.f32 0.0, %v429
        %v431 = vpop.f32.mrb[0].mxu0
        %v432 = vadd.f32 0.0, %v431
        %v433 = vpop.f32.mrb[0].mxu0
        %v434 = vadd.f32 0.0, %v433
        %435 = vmatprep.mubr.bf16.mxu0 0
        %436 = vmatmul.mubr.bf16.gmra.mrb[0].mxu0 %v314
        %v437 = vpop.f32.mrb[0].mxu0
        %v438 = vadd.f32 0.0, %v437
        %v439 = vpop.f32.mrb[0].mxu0
        %v440 = vadd.f32 0.0, %v439
        %v441 = vpop.f32.mrb[0].mxu0
        %v442 = vadd.f32 0.0, %v441
        %v443 = vpop.f32.mrb[0].mxu0
        %v444 = vadd.f32 0.0, %v443
        %445 = vmatprep.mubr.bf16.mxu0 0
        %446 = vmatmul.mubr.bf16.gmra.mrb[0].mxu0 %v317
        %v447 = vpop.f32.mrb[0].mxu0
        %v448 = vadd.f32 0.0, %v447
        %v449 = vpop.f32.mrb[0].mxu0
        %v450 = vadd.f32 0.0, %v449
        %v451 = vpop.f32.mrb[0].mxu0
        %v452 = vadd.f32 0.0, %v451
        %v453 = vpop.f32.mrb[0].mxu0
        %v454 = vadd.f32 0.0, %v453
        %455 = vmatprep.mubr.bf16.mxu0 0
        %456 = vmatmul.mubr.bf16.gmra.mrb[0].mxu0 %v320
        %v457 = vpop.f32.mrb[0].mxu0
        %v458 = vadd.f32 0.0, %v457
        %v459 = vpop.f32.mrb[0].mxu0
        %v460 = vadd.f32 0.0, %v459
        %v461 = vpop.f32.mrb[0].mxu0
        %v462 = vadd.f32 0.0, %v461
        %v463 = vpop.f32.mrb[0].mxu0
        %v464 = vadd.f32 0.0, %v463
        %465 = vmatprep.mubr.bf16.mxu0 0
        %466 = vmatmul.mubr.bf16.gmra.mrb[0].mxu0 %v323
        %v467 = vpop.f32.mrb[0].mxu0
        %v468 = vadd.f32 0.0, %v467
        %v469 = vpop.f32.mrb[0].mxu0
        %v470 = vadd.f32 0.0, %v469
        %v471 = vpop.f32.mrb[0].mxu0
        %v472 = vadd.f32 0.0, %v471
        %v473 = vpop.f32.mrb[0].mxu0
        %v474 = vadd.f32 0.0, %v473
        %475 = vmatprep.mubr.bf16.mxu0 0
        %476 = vmatmul.mubr.bf16.gmra.mrb[0].mxu0 %v326
        %v477 = vpop.f32.mrb[0].mxu0
        %v478 = vadd.f32 0.0, %v477
        %v479 = vpop.f32.mrb[0].mxu0
        %v480 = vadd.f32 0.0, %v479
        %v481 = vpop.f32.mrb[0].mxu0
        %v482 = vadd.f32 0.0, %v481
        %v483 = vpop.f32.mrb[0].mxu0
        %v484 = vadd.f32 0.0, %v483
        %485 = vmatprep.mubr.bf16.mxu0 0
        %486 = vmatmul.mubr.bf16.gmra.mrb[0].mxu0 %v329
        %v487 = vpop.f32.mrb[0].mxu0
        %v488 = vadd.f32 0.0, %v487
        %v489 = vpop.f32.mrb[0].mxu0
        %v490 = vadd.f32 0.0, %v489
        %v491 = vpop.f32.mrb[0].mxu0
        %v492 = vadd.f32 0.0, %v491
        %v493 = vpop.f32.mrb[0].mxu0
        %v494 = vadd.f32 0.0, %v493
        %495 = vmatprep.mubr.bf16.mxu0 0
        %496 = vmatmul.mubr.bf16.gmra.mrb[0].mxu0 %v332
        %v497 = vpop.f32.mrb[0].mxu0
        %v498 = vadd.f32 0.0, %v497
        %v499 = vpop.f32.mrb[0].mxu0
        %v500 = vadd.f32 0.0, %v499
        %v501 = vpop.f32.mrb[0].mxu0
        %v502 = vadd.f32 0.0, %v501
        %v503 = vpop.f32.mrb[0].mxu0
        %v504 = vadd.f32 0.0, %v503
        %505 = vmatprep.mubr.bf16.mxu0 0
        %506 = vmatmul.mubr.bf16.gmra.mrb[0].mxu0 %v335
        %v507 = vpop.f32.mrb[0].mxu0
        %v508 = vadd.f32 0.0, %v507
        %v509 = vpop.f32.mrb[0].mxu0
        %v510 = vadd.f32 0.0, %v509
        %v511 = vpop.f32.mrb[0].mxu0
        %v512 = vadd.f32 0.0, %v511
        %v513 = vpop.f32.mrb[0].mxu0
        %v514 = vadd.f32 0.0, %v513
        %515 = vmatprep.mubr.bf16.mxu0 0
        %516 = vmatmul.mubr.bf16.gmra.mrb[0].mxu0 %v338
        %v517 = vpop.f32.mrb[0].mxu0
        %v518 = vadd.f32 0.0, %v517
        %v519 = vpop.f32.mrb[0].mxu0
        %v520 = vadd.f32 0.0, %v519
        %v521 = vpop.f32.mrb[0].mxu0
        %v522 = vadd.f32 0.0, %v521
        %v523 = vpop.f32.mrb[0].mxu0
        %v524 = vadd.f32 0.0, %v523
        %525 = vmatprep.mubr.bf16.mxu0 0
        %526 = vmatmul.mubr.bf16.gmra.mrb[0].mxu0 %v341
        %v527 = vpop.f32.mrb[0].mxu0
        %v528 = vadd.f32 0.0, %v527
        %v529 = vpop.f32.mrb[0].mxu0
        %v530 = vadd.f32 0.0, %v529
        %v531 = vpop.f32.mrb[0].mxu0
        %v532 = vadd.f32 0.0, %v531
        %v533 = vpop.f32.mrb[0].mxu0
        %v534 = vadd.f32 0.0, %v533
        %535 = vdwg.mxu0
        %v536 = vpack.c.bf16 %v382, %v378
        %v537 = vpack.c.bf16 %v384, %v380
        %v538 = vpack.c.bf16 %v392, %v388
        %v539 = vpack.c.bf16 %v394, %v390
        %v540 = vpack.c.bf16 %v402, %v398
        %v541 = vpack.c.bf16 %v404, %v400
        %v542 = vpack.c.bf16 %v412, %v408
        %v543 = vpack.c.bf16 %v414, %v410
        %v544 = vpack.c.bf16 %v422, %v418
        %v545 = vpack.c.bf16 %v424, %v420
        %v546 = vpack.c.bf16 %v432, %v428
        %v547 = vpack.c.bf16 %v434, %v430
        %v548 = vpack.c.bf16 %v442, %v438
        %v549 = vpack.c.bf16 %v444, %v440
        %v550 = vpack.c.bf16 %v452, %v448
        %v551 = vpack.c.bf16 %v454, %v450
        %v552 = vpack.c.bf16 %v462, %v458
        %v553 = vpack.c.bf16 %v464, %v460
        %v554 = vpack.c.bf16 %v472, %v468
        %v555 = vpack.c.bf16 %v474, %v470
        %v556 = vpack.c.bf16 %v482, %v478
        %v557 = vpack.c.bf16 %v484, %v480
        %v558 = vpack.c.bf16 %v492, %v488
        %v559 = vpack.c.bf16 %v494, %v490
        %v560 = vpack.c.bf16 %v502, %v498
        %v561 = vpack.c.bf16 %v504, %v500
        %v562 = vpack.c.bf16 %v512, %v508
        %v563 = vpack.c.bf16 %v514, %v510
        %v564 = vpack.c.bf16 %v522, %v518
        %v565 = vpack.c.bf16 %v524, %v520
        %v566 = vpack.c.bf16 %v532, %v528
        %v567 = vpack.c.bf16 %v534, %v530
        %v600 = vunpack.c.l.b16 %v536
        %v601 = vunpack.c.l.b16 %v537
        %v602 = vunpack.c.h.b16 %v536
        %v603 = vunpack.c.h.b16 %v537
        %v604 = vunpack.c.l.b16 %v538
        %v605 = vunpack.c.l.b16 %v539
        %v606 = vunpack.c.h.b16 %v538
        %v607 = vunpack.c.h.b16 %v539
        %v608 = vunpack.c.l.b16 %v540
        %v609 = vunpack.c.l.b16 %v541
        %v610 = vunpack.c.h.b16 %v540
        %v611 = vunpack.c.h.b16 %v541
        %v612 = vunpack.c.l.b16 %v542
        %v613 = vunpack.c.l.b16 %v543
        %v614 = vunpack.c.h.b16 %v542
        %v615 = vunpack.c.h.b16 %v543
        %v616 = vunpack.c.l.b16 %v544
        %v617 = vunpack.c.l.b16 %v545
        %v618 = vunpack.c.h.b16 %v544
        %v619 = vunpack.c.h.b16 %v545
        %v620 = vunpack.c.l.b16 %v546
        %v621 = vunpack.c.l.b16 %v547
        %v622 = vunpack.c.h.b16 %v546
        %v623 = vunpack.c.h.b16 %v547
        %v624 = vunpack.c.l.b16 %v548
        %v625 = vunpack.c.l.b16 %v549
        %v626 = vunpack.c.h.b16 %v548
        %v627 = vunpack.c.h.b16 %v549
        %v628 = vunpack.c.l.b16 %v550
        %v629 = vunpack.c.l.b16 %v551
        %v630 = vunpack.c.h.b16 %v550
        %v631 = vunpack.c.h.b16 %v551
        %v632 = vunpack.c.l.b16 %v552
        %v633 = vunpack.c.l.b16 %v553
        %v634 = vunpack.c.h.b16 %v552
        %v635 = vunpack.c.h.b16 %v553
        %v636 = vunpack.c.l.b16 %v554
        %v637 = vunpack.c.l.b16 %v555
        %v638 = vunpack.c.h.b16 %v554
        %v639 = vunpack.c.h.b16 %v555
        %v640 = vunpack.c.l.b16 %v556
        %v641 = vunpack.c.l.b16 %v557
        %v642 = vunpack.c.h.b16 %v556
        %v643 = vunpack.c.h.b16 %v557
        %v644 = vunpack.c.l.b16 %v558
        %v645 = vunpack.c.l.b16 %v559
        %v646 = vunpack.c.h.b16 %v558
        %v647 = vunpack.c.h.b16 %v559
        %v648 = vunpack.c.l.b16 %v560
        %v649 = vunpack.c.l.b16 %v561
        %v650 = vunpack.c.h.b16 %v560
        %v651 = vunpack.c.h.b16 %v561
        %v652 = vunpack.c.l.b16 %v562
        %v653 = vunpack.c.l.b16 %v563
        %v654 = vunpack.c.h.b16 %v562
        %v655 = vunpack.c.h.b16 %v563
        %v656 = vunpack.c.l.b16 %v564
        %v657 = vunpack.c.l.b16 %v565
        %v658 = vunpack.c.h.b16 %v564
        %v659 = vunpack.c.h.b16 %v565
        %v660 = vunpack.c.l.b16 %v566
        %v661 = vunpack.c.l.b16 %v567
        %v662 = vunpack.c.h.b16 %v566
        %v663 = vunpack.c.h.b16 %v567
        %v664 = vpack.c.b16 %v601, %v600
        %v665 = vpack.c.b16 %v603, %v602
        %v666 = vpack.c.b16 %v605, %v604
        %v667 = vpack.c.b16 %v607, %v606
        %v668 = vpack.c.b16 %v609, %v608
        %v669 = vpack.c.b16 %v611, %v610
        %v670 = vpack.c.b16 %v613, %v612
        %v671 = vpack.c.b16 %v615, %v614
        %v672 = vpack.c.b16 %v617, %v616
        %v673 = vpack.c.b16 %v619, %v618
        %v674 = vpack.c.b16 %v621, %v620
        %v675 = vpack.c.b16 %v623, %v622
        %v676 = vpack.c.b16 %v625, %v624
        %v677 = vpack.c.b16 %v627, %v626
        %v678 = vpack.c.b16 %v629, %v628
        %v679 = vpack.c.b16 %v631, %v630
        %v680 = vpack.c.b16 %v633, %v632
        %v681 = vpack.c.b16 %v635, %v634
        %v682 = vpack.c.b16 %v637, %v636
        %v683 = vpack.c.b16 %v639, %v638
        %v684 = vpack.c.b16 %v641, %v640
        %v685 = vpack.c.b16 %v643, %v642
        %v686 = vpack.c.b16 %v645, %v644
        %v687 = vpack.c.b16 %v647, %v646
        %v688 = vpack.c.b16 %v649, %v648
        %v689 = vpack.c.b16 %v651, %v650
        %v690 = vpack.c.b16 %v653, %v652
        %v691 = vpack.c.b16 %v655, %v654
        %v692 = vpack.c.b16 %v657, %v656
        %v693 = vpack.c.b16 %v659, %v658
        %v694 = vpack.c.b16 %v661, %v660
        %v695 = vpack.c.b16 %v663, %v662
        %728 = vst [vmem:[%s137] sm:$0xff] %v664
        %729 = vst [vmem:[%s137 + $0x8] sm:$0xff] %v665
        %730 = vst [vmem:[%s137 + $0x10] sm:$0xff] %v666
        %731 = vst [vmem:[%s137 + $0x18] sm:$0xff] %v667
        %732 = vst [vmem:[%s137 + $0x20] sm:$0xff] %v668
        %733 = vst [vmem:[%s137 + $0x28] sm:$0xff] %v669
        %734 = vst [vmem:[%s137 + $0x30] sm:$0xff] %v670
        %735 = vst [vmem:[%s137 + $0x38] sm:$0xff] %v671
        %736 = vst [vmem:[%s137 + $0x40] sm:$0xff] %v672
        %737 = vst [vmem:[%s137 + $0x48] sm:$0xff] %v673
        %738 = vst [vmem:[%s137 + $0x50] sm:$0xff] %v674
        %739 = vst [vmem:[%s137 + $0x58] sm:$0xff] %v675
        %740 = vst [vmem:[%s137 + $0x60] sm:$0xff] %v676
        %741 = vst [vmem:[%s137 + $0x68] sm:$0xff] %v677
        %742 = vst [vmem:[%s137 + $0x70] sm:$0xff] %v678
        %743 = vst [vmem:[%s137 + $0x78] sm:$0xff] %v679
        %744 = vst [vmem:[%s137 + $0x80] sm:$0xff] %v680
        %745 = vst [vmem:[%s137 + $0x88] sm:$0xff] %v681
        %746 = vst [vmem:[%s137 + $0x90] sm:$0xff] %v682
        %747 = vst [vmem:[%s137 + $0x98] sm:$0xff] %v683
        %748 = vst [vmem:[%s137 + $0xa0] sm:$0xff] %v684
        %749 = vst [vmem:[%s137 + $0xa8] sm:$0xff] %v685
        %750 = vst [vmem:[%s137 + $0xb0] sm:$0xff] %v686
        %751 = vst [vmem:[%s137 + $0xb8] sm:$0xff] %v687
        %752 = vst [vmem:[%s137 + $0xc0] sm:$0xff] %v688
        %753 = vst [vmem:[%s137 + $0xc8] sm:$0xff] %v689
        %754 = vst [vmem:[%s137 + $0xd0] sm:$0xff] %v690
        %755 = vst [vmem:[%s137 + $0xd8] sm:$0xff] %v691
        %756 = vst [vmem:[%s137 + $0xe0] sm:$0xff] %v692
        %757 = vst [vmem:[%s137 + $0xe8] sm:$0xff] %v693
        %758 = vst [vmem:[%s137 + $0xf0] sm:$0xff] %v694
        %759 = vst [vmem:[%s137 + $0xf8] sm:$0xff] %v695
        %s760 = sand.u32 %s71, 1
        %s761 = scalar_lea.sflag [#allocation3], %s760
        %s762 = sand.u32 %s71, 1
        %s763 = smul.addr %s762, 256
        %s764 = scalar_lea.vmem [#allocation2], %s763
        // Predicated region
        $region29: #{tpu_custom_call.1} parent=27 // pred_check
          %p765 = pneg %p81
        $region30: #{tpu_custom_call.1} parent=27 // pred_check_branch
          %767 = sbr.rel (%p765) target = $region32
        $region31: #{tpu_custom_call.1} parent=27 // pred_region
          %s768 = smul.u32 32, %s16
          %s770 = ssub.s32 4096, 4096
          %771 = vsyncadd %s761, %s770
          %s772 = smul.addr %s768, 2
          %s773 = smul.addr %s772, 64
          %s774 = scalar_lea.hbm %s2, %s773
          %s775 = sshll.u32 %s764, 4
          %s776 = int_to_ptr.vmem [resolvable:$true] %s775
          %781 = dma.vmem_to_hbm [thread:$0]  %s776, 4096, %s774, %s761, 128, 128, 8
        $region32: #{tpu_custom_call.1} parent=27 // pred_fallthru
          _
      $region28: #{tpu_custom_call.1} parent=5 // pred_fallthru
        _
      %p782 = scmp.le.s32.totalorder 2, %s11
      // Predicated region
      $region33: #{tpu_custom_call.1} parent=5 // pred_check
        %p783 = pneg %p782
      $region34: #{tpu_custom_call.1} parent=5 // pred_check_branch
        %785 = sbr.rel (%p783) target = $region36
      $region35: #{tpu_custom_call.1} parent=5 // pred_region
        %s786 = ssub.s32 %s11, 2
        // Predicated region
        $region37: #{tpu_custom_call.1} parent=35 // pred_check
          %p787 = pneg %p87
        $region38: #{tpu_custom_call.1} parent=35 // pred_check_branch
          %789 = sbr.rel (%p787) target = $region40
        $region39: #{tpu_custom_call.1} parent=35 // pred_region
          %s790 = sand.u32 %s72, 1
          %s791 = scalar_lea.sflag [#allocation3], %s790
          %s792 = sand.u32 %s72, 1
          %s793 = smul.addr %s792, 256
          %s794 = scalar_lea.vmem [#allocation2], %s793
          %795 = dma.done %s791, 4096
        $region40: #{tpu_custom_call.1} parent=35 // pred_fallthru
          _
      $region36: #{tpu_custom_call.1} parent=5 // pred_fallthru
        _
    $region6: #{tpu_custom_call.1} parent=1 // loop_footer
      %s15 = sadd.s32 1, %s11
    $region7: #{tpu_custom_call.1} parent=1 // loop_footer_branch
      %10 = sbr.rel target = $region3
    $region8: #{tpu_custom_call.1} parent=1 // loop_exit
      _
    %796 = vsyncpa [#allocation3], 1
    %s797 = scalar_lea.sflag [#allocation3], 1
    %798 = vsyncpa %s797, 1

</llo_original>
